<compile_context>
chip_gen: v6e
topology: v6e:2x2x1
jax: 0.10.0
libtpu: 0.0.40
codegen_flags: <defaults>
</compile_context>

<pallas_src>
import numpy as np

import jax
import jax.numpy as jnp
from jax.experimental import pallas as pl
from jax.experimental.pallas import tpu as pltpu

# Model hyperparameters (from the PyTorch module)
BATCH_SIZE = 1
HIDDEN_SIZE = 4
INPUT_SIZE = 4      # vocabulary size for the Embedding
EMB_DIM = 5
NUM_CLASS = 4
NUM_LAYERS = 1      # single-layer RNN
SEQ_LEN = 5         # small sequence length consistent with the lesson ("hello"-style)

# --- packed parameter buffer layouts (built once at init, zero padded) -------
PC = 8              # narrow packed width (>= max(EMB_DIM, HIDDEN_SIZE))
EMB_ROW = 0         # rows 0..3   : embedding table (V=4, E=5) in cols 0:5
WIH_ROW = 8         # rows 8..15  : W_ih^T          (E=5, H=4) in cols 0:4
WHH_ROW = 16        # rows 16..23 : W_hh^T          (H=4, H=4) in cols 0:4
BRNN_ROW = 24       # row 24      : b_ih + b_hh                in cols 0:4
PR = 32             # total rows of the narrow packed buffer

OUT_SUBLANES = 8    # output tile rows  (>= SEQ_LEN)
OUT_LANES = 128     # output tile lanes (full vreg lane width -> unmasked store)
FC_WFC_ROW = 0      # rows 0..7 of fc buffer : W_fc^T (H=4, C=4) in cols 0:4
FC_BFC_ROW = PC     # row 8                  : b_fc             in cols 0:4
FC_ROWS = 16        # fc buffer rows, padded to a multiple of 8


def rnn_kernel(idx_ref, p_ref, fc_ref, out_ref, xs_ref, hs_ref):
    """Embedding gather + Elman RNN recurrence + Linear head, single invocation.

    idx_ref : (T,)      int32 SMEM (scalar prefetch) token ids
    p_ref   : (PR, PC)  f32   packed emb / W_ih^T / W_hh^T / b_rnn buffer
    fc_ref  : (16, 128) f32   packed W_fc^T (rows 0..7) and b_fc (row 8)
    out_ref : (8, 128)  f32   lane-dense logits tile; valid region [:T, :C]
    xs_ref  : (8, PC)   f32   VMEM scratch: gathered embeddings, then pre-activations
    hs_ref  : (8, PC)   f32   VMEM scratch: per-step hidden states
    """
    T = idx_ref.shape[0]

    # Zero the scratch slabs (rows >= T stay exactly zero -> padded math exact).
    xs_ref[...] = jnp.zeros_like(xs_ref)
    hs_ref[...] = jnp.zeros_like(hs_ref)

    # --- embedding: per-token dynamic-row load + sublane-offset store --------
    # (EMB_ROW == 0, so the clamped token id is directly the packed row index.)
    for t in range(T):
        tok = jnp.minimum(jnp.maximum(idx_ref[t], 0), INPUT_SIZE - 1)
        xs_ref[pl.ds(t, 1), :] = p_ref[pl.ds(tok, 1), :]

    # --- static slices recover the (zero-padded) weights ----------------------
    wih = p_ref[WIH_ROW:WIH_ROW + PC, :]            # (PC, PC), nonzero in [0:5, 0:4]
    whh = p_ref[WHH_ROW:WHH_ROW + PC, :]            # (PC, PC), nonzero in [0:4, 0:4]
    b_rnn = p_ref[BRNN_ROW:BRNN_ROW + 1, :]         # (1, PC)

    # --- hoisted input projection for all timesteps (one MXU call) -----------
    # Written back to scratch; per-step rows are re-loaded at a static sublane
    # offset (load slot) instead of sliced out of a live vreg (XLU).
    xs_ref[...] = (jnp.dot(xs_ref[...], wih, preferred_element_type=jnp.float32)
                   + b_rnn)

    # --- serial tanh recurrence, fully unrolled; h lives in vregs ------------
    # Pad columns stay exactly zero: tanh(0 + 0) == 0.
    h = jnp.zeros((1, PC), jnp.float32)
    for t in range(T):
        pre_t = xs_ref[pl.ds(t, 1), :]
        h = jnp.tanh(pre_t + jnp.dot(h, whh, preferred_element_type=jnp.float32))
        hs_ref[pl.ds(t, 1), :] = h

    # --- fc head: one MXU call producing a lane-dense (8, 128) tile ----------
    wfc = fc_ref[FC_WFC_ROW:FC_WFC_ROW + PC, :]     # (PC, 128), nonzero in [0:4, 0:4]
    b_fc = fc_ref[FC_BFC_ROW:FC_BFC_ROW + 1, :]     # (1, 128)
    out_ref[...] = (jnp.dot(hs_ref[...], wfc, preferred_element_type=jnp.float32)
                    + b_fc)


# --- one-time parameter packing (host-side numpy; NOT in the per-call path) --
def pack_core_params(params):
    emb, w_ih, w_hh, b_ih, b_hh, _, _ = params
    p = np.zeros((PR, PC), np.float32)
    p[EMB_ROW:EMB_ROW + INPUT_SIZE, 0:EMB_DIM] = np.asarray(emb)
    p[WIH_ROW:WIH_ROW + EMB_DIM, 0:HIDDEN_SIZE] = np.asarray(w_ih).T
    p[WHH_ROW:WHH_ROW + HIDDEN_SIZE, 0:HIDDEN_SIZE] = np.asarray(w_hh).T
    p[BRNN_ROW, 0:HIDDEN_SIZE] = np.asarray(b_ih) + np.asarray(b_hh)
    return jnp.asarray(p)


def pack_fc_params(params):
    _, _, _, _, _, w_fc, b_fc = params
    p = np.zeros((FC_ROWS, OUT_LANES), np.float32)
    p[FC_WFC_ROW:FC_WFC_ROW + HIDDEN_SIZE, 0:NUM_CLASS] = np.asarray(w_fc).T
    p[FC_BFC_ROW, 0:NUM_CLASS] = np.asarray(b_fc)
    return jnp.asarray(p)


def model_forward(idx_bt, p_core, p_fc):
    """idx_bt: (B, T) int32 token ids (B == 1). Returns (B*T, NUM_CLASS) float32.

    p_core / p_fc are the persistent packed parameter buffers built once by
    pack_core_params / pack_fc_params.
    """
    B, T = idx_bt.shape
    assert B == 1, "module fixes batch_size=1"
    assert T <= OUT_SUBLANES

    idx_flat = idx_bt.reshape(-1).astype(jnp.int32)   # (T,) -> SMEM scalar prefetch

    grid_spec = pltpu.PrefetchScalarGridSpec(
        num_scalar_prefetch=1,
        grid=(1,),
        in_specs=[
            pl.BlockSpec((PR, PC), lambda i, idx: (0, 0)),
            pl.BlockSpec((FC_ROWS, OUT_LANES), lambda i, idx: (0, 0)),
        ],
        out_specs=pl.BlockSpec((OUT_SUBLANES, OUT_LANES), lambda i, idx: (0, 0)),
        scratch_shapes=[
            pltpu.VMEM((OUT_SUBLANES, PC), jnp.float32),   # xs / pre scratch
            pltpu.VMEM((OUT_SUBLANES, PC), jnp.float32),   # hidden-state scratch
        ],
    )

    out_pad = pl.pallas_call(
        rnn_kernel,
        out_shape=jax.ShapeDtypeStruct((OUT_SUBLANES, OUT_LANES), jnp.float32),
        grid_spec=grid_spec,
        compiler_params=pltpu.CompilerParams(
            dimension_semantics=("arbitrary",)),
    )(idx_flat, p_core, p_fc)

    # kernel emits a padded lane-dense tile; valid logits live in [:T, :C].
    # This is the PyTorch .view(-1, num_class) for B == 1.
    return out_pad[:T, :NUM_CLASS].reshape(-1, NUM_CLASS)


def model_forward_ref(idx_bt, params):
    """Pure-JAX reference for correctness checking."""
    emb, w_ih, w_hh, b_ih, b_hh, w_fc, b_fc = params
    x = jnp.take(emb, idx_bt, axis=0)                 # (B, T, E)
    B, T, _ = x.shape
    h = jnp.zeros((B, HIDDEN_SIZE), jnp.float32)
    outs = []
    for t in range(T):
        h = jnp.tanh(x[:, t, :] @ w_ih.T + b_ih + h @ w_hh.T + b_hh)
        outs.append(h @ w_fc.T + b_fc)
    y = jnp.stack(outs, axis=1)                       # (B, T, C)
    return y.reshape(-1, NUM_CLASS)


def init_params(key):
    ks = jax.random.split(key, 7)
    emb = jax.random.normal(ks[0], (INPUT_SIZE, EMB_DIM), jnp.float32) * 0.5
    w_ih = jax.random.normal(ks[1], (HIDDEN_SIZE, EMB_DIM), jnp.float32) * 0.5
    w_hh = jax.random.normal(ks[2], (HIDDEN_SIZE, HIDDEN_SIZE), jnp.float32) * 0.5
    b_ih = jax.random.normal(ks[3], (HIDDEN_SIZE,), jnp.float32) * 0.1
    b_hh = jax.random.normal(ks[4], (HIDDEN_SIZE,), jnp.float32) * 0.1
    w_fc = jax.random.normal(ks[5], (NUM_CLASS, HIDDEN_SIZE), jnp.float32) * 0.5
    b_fc = jax.random.normal(ks[6], (NUM_CLASS,), jnp.float32) * 0.1
    return (emb, w_ih, w_hh, b_ih, b_hh, w_fc, b_fc)


if __name__ == "__main__":
    key = jax.random.PRNGKey(0)
    pkey, xkey = jax.random.split(key)
    params = init_params(pkey)

    # Pack ONCE at init (feedback #1): persistent device arrays, zero per-call work.
    p_core = jax.device_put(pack_core_params(params))
    p_fc = jax.device_put(pack_fc_params(params))

    # input token ids, shape (batch_size, seq_len), values in [0, INPUT_SIZE)
    x = jax.random.randint(xkey, (BATCH_SIZE, SEQ_LEN), 0, INPUT_SIZE, jnp.int32)

    fwd = jax.jit(model_forward)
    out = jax.block_until_ready(fwd(x, p_core, p_fc))

    ref = model_forward_ref(x, params)
    assert out.shape == (BATCH_SIZE * SEQ_LEN, NUM_CLASS)
    assert jnp.allclose(out, ref, atol=1e-4, rtol=1e-4), (out, ref)

    print("KERNEL_OK")
</pallas_src>

<mosaic_0001>
module attributes {stable_mosaic.version = 11 : i64} {
  func.func @rnn_kernel(%arg0: i32, %arg1: memref<5xi32, #tpu.memory_space<smem>>, %arg2: memref<32x8xf32, #tpu.memory_space<vmem>>, %arg3: memref<16x128xf32, #tpu.memory_space<vmem>>, %arg4: memref<8x128xf32, #tpu.memory_space<vmem>>, %arg5: memref<8x8xf32, #tpu.memory_space<vmem>>, %arg6: memref<8x8xf32, #tpu.memory_space<vmem>>) attributes {dimension_semantics = [#tpu.dimension_semantics<arbitrary>], iteration_bounds = array<i64: 1>, scalar_prefetch = 1 : i64, scratch_operands = 2 : i64, tpu.core_type = #tpu.core_type<tc>, window_params = [{pipeline_mode = #tpu.pipeline_mode<synchronous>, transform_indices = @transform_0, window_bounds = array<i64: 32, 8>}, {pipeline_mode = #tpu.pipeline_mode<synchronous>, transform_indices = @transform_1, window_bounds = array<i64: 16, 128>}, {pipeline_mode = #tpu.pipeline_mode<synchronous>, transform_indices = @transform_2, window_bounds = array<i64: 8, 128>}]} {
    %cst = arith.constant 0.000000e+00 : f32
    %0 = vector.broadcast %cst : f32 to vector<8x8xf32>
    %c0 = arith.constant 0 : index
    %c0_0 = arith.constant 0 : index
    %1 = vector.load %arg5[%c0, %c0_0] : memref<8x8xf32, #tpu.memory_space<vmem>>, vector<8x8xf32>
    tpu.vector_store %arg5[%c0, %c0_0], %0 {strides = array<i32>} : memref<8x8xf32, #tpu.memory_space<vmem>>, vector<8x8xf32>,
    %cst_1 = arith.constant 0.000000e+00 : f32
    %2 = vector.broadcast %cst_1 : f32 to vector<8x8xf32>
    %c0_2 = arith.constant 0 : index
    %c0_3 = arith.constant 0 : index
    %3 = vector.load %arg6[%c0_2, %c0_3] : memref<8x8xf32, #tpu.memory_space<vmem>>, vector<8x8xf32>
    tpu.vector_store %arg6[%c0_2, %c0_3], %2 {strides = array<i32>} : memref<8x8xf32, #tpu.memory_space<vmem>>, vector<8x8xf32>,
    %c0_4 = arith.constant 0 : index
    %4 = memref.load %arg1[%c0_4] : memref<5xi32, #tpu.memory_space<smem>>
    %c0_i32 = arith.constant 0 : i32
    %5 = arith.maxsi %4, %c0_i32 : i32
    %c3_i32 = arith.constant 3 : i32
    %6 = arith.minsi %5, %c3_i32 : i32
    %7 = arith.index_cast %6 : i32 to index
    %c0_5 = arith.constant 0 : index
    %8 = vector.load %arg2[%7, %c0_5] : memref<32x8xf32, #tpu.memory_space<vmem>>, vector<1x8xf32>
    %c0_6 = arith.constant 0 : index
    %c0_7 = arith.constant 0 : index
    %9 = vector.load %arg5[%c0_6, %c0_7] : memref<8x8xf32, #tpu.memory_space<vmem>>, vector<1x8xf32>
    tpu.vector_store %arg5[%c0_6, %c0_7], %8 {strides = array<i32>} : memref<8x8xf32, #tpu.memory_space<vmem>>, vector<1x8xf32>,
    %c1 = arith.constant 1 : index
    %10 = memref.load %arg1[%c1] : memref<5xi32, #tpu.memory_space<smem>>
    %c0_i32_8 = arith.constant 0 : i32
    %11 = arith.maxsi %10, %c0_i32_8 : i32
    %c3_i32_9 = arith.constant 3 : i32
    %12 = arith.minsi %11, %c3_i32_9 : i32
    %13 = arith.index_cast %12 : i32 to index
    %c0_10 = arith.constant 0 : index
    %14 = vector.load %arg2[%13, %c0_10] : memref<32x8xf32, #tpu.memory_space<vmem>>, vector<1x8xf32>
    %c1_11 = arith.constant 1 : index
    %c0_12 = arith.constant 0 : index
    %15 = vector.load %arg5[%c1_11, %c0_12] : memref<8x8xf32, #tpu.memory_space<vmem>>, vector<1x8xf32>
    tpu.vector_store %arg5[%c1_11, %c0_12], %14 {strides = array<i32>} : memref<8x8xf32, #tpu.memory_space<vmem>>, vector<1x8xf32>,
    %c2 = arith.constant 2 : index
    %16 = memref.load %arg1[%c2] : memref<5xi32, #tpu.memory_space<smem>>
    %c0_i32_13 = arith.constant 0 : i32
    %17 = arith.maxsi %16, %c0_i32_13 : i32
    %c3_i32_14 = arith.constant 3 : i32
    %18 = arith.minsi %17, %c3_i32_14 : i32
    %19 = arith.index_cast %18 : i32 to index
    %c0_15 = arith.constant 0 : index
    %20 = vector.load %arg2[%19, %c0_15] : memref<32x8xf32, #tpu.memory_space<vmem>>, vector<1x8xf32>
    %c2_16 = arith.constant 2 : index
    %c0_17 = arith.constant 0 : index
    %21 = vector.load %arg5[%c2_16, %c0_17] : memref<8x8xf32, #tpu.memory_space<vmem>>, vector<1x8xf32>
    tpu.vector_store %arg5[%c2_16, %c0_17], %20 {strides = array<i32>} : memref<8x8xf32, #tpu.memory_space<vmem>>, vector<1x8xf32>,
    %c3 = arith.constant 3 : index
    %22 = memref.load %arg1[%c3] : memref<5xi32, #tpu.memory_space<smem>>
    %c0_i32_18 = arith.constant 0 : i32
    %23 = arith.maxsi %22, %c0_i32_18 : i32
    %c3_i32_19 = arith.constant 3 : i32
    %24 = arith.minsi %23, %c3_i32_19 : i32
    %25 = arith.index_cast %24 : i32 to index
    %c0_20 = arith.constant 0 : index
    %26 = vector.load %arg2[%25, %c0_20] : memref<32x8xf32, #tpu.memory_space<vmem>>, vector<1x8xf32>
    %c3_21 = arith.constant 3 : index
    %c0_22 = arith.constant 0 : index
    %27 = vector.load %arg5[%c3_21, %c0_22] : memref<8x8xf32, #tpu.memory_space<vmem>>, vector<1x8xf32>
    tpu.vector_store %arg5[%c3_21, %c0_22], %26 {strides = array<i32>} : memref<8x8xf32, #tpu.memory_space<vmem>>, vector<1x8xf32>,
    %c4 = arith.constant 4 : index
    %28 = memref.load %arg1[%c4] : memref<5xi32, #tpu.memory_space<smem>>
    %c0_i32_23 = arith.constant 0 : i32
    %29 = arith.maxsi %28, %c0_i32_23 : i32
    %c3_i32_24 = arith.constant 3 : i32
    %30 = arith.minsi %29, %c3_i32_24 : i32
    %31 = arith.index_cast %30 : i32 to index
    %c0_25 = arith.constant 0 : index
    %32 = vector.load %arg2[%31, %c0_25] : memref<32x8xf32, #tpu.memory_space<vmem>>, vector<1x8xf32>
    %c4_26 = arith.constant 4 : index
    %c0_27 = arith.constant 0 : index
    %33 = vector.load %arg5[%c4_26, %c0_27] : memref<8x8xf32, #tpu.memory_space<vmem>>, vector<1x8xf32>
    tpu.vector_store %arg5[%c4_26, %c0_27], %32 {strides = array<i32>} : memref<8x8xf32, #tpu.memory_space<vmem>>, vector<1x8xf32>,
    %c8 = arith.constant 8 : index
    %c0_28 = arith.constant 0 : index
    %34 = vector.load %arg2[%c8, %c0_28] : memref<32x8xf32, #tpu.memory_space<vmem>>, vector<8x8xf32>
    %c16 = arith.constant 16 : index
    %c0_29 = arith.constant 0 : index
    %35 = vector.load %arg2[%c16, %c0_29] : memref<32x8xf32, #tpu.memory_space<vmem>>, vector<8x8xf32>
    %c24 = arith.constant 24 : index
    %c0_30 = arith.constant 0 : index
    %36 = vector.load %arg2[%c24, %c0_30] : memref<32x8xf32, #tpu.memory_space<vmem>>, vector<1x8xf32>
    %c0_31 = arith.constant 0 : index
    %c0_32 = arith.constant 0 : index
    %37 = vector.load %arg5[%c0_31, %c0_32] : memref<8x8xf32, #tpu.memory_space<vmem>>, vector<8x8xf32>
    %cst_33 = arith.constant dense<0.000000e+00> : vector<8x8xf32>
    %38 = tpu.matmul %37, %34, %cst_33 {dimension_numbers = #tpu.dot_dimension_numbers<[1], [0], [0], [1], [0, 0, 1, 1], [], []>} : vector<8x8xf32>, vector<8x8xf32>, vector<8x8xf32> -> vector<8x8xf32>
    %39 = vector.broadcast %36 : vector<1x8xf32> to vector<8x8xf32>
    %40 = arith.addf %38, %39 : vector<8x8xf32>
    %c0_34 = arith.constant 0 : index
    %c0_35 = arith.constant 0 : index
    %41 = vector.load %arg5[%c0_34, %c0_35] : memref<8x8xf32, #tpu.memory_space<vmem>>, vector<8x8xf32>
    tpu.vector_store %arg5[%c0_34, %c0_35], %40 {strides = array<i32>} : memref<8x8xf32, #tpu.memory_space<vmem>>, vector<8x8xf32>,
    %cst_36 = arith.constant 0.000000e+00 : f32
    %42 = vector.broadcast %cst_36 : f32 to vector<1x8xf32>
    %c0_37 = arith.constant 0 : index
    %c0_38 = arith.constant 0 : index
    %43 = vector.load %arg5[%c0_37, %c0_38] : memref<8x8xf32, #tpu.memory_space<vmem>>, vector<1x8xf32>
    %cst_39 = arith.constant dense<0.000000e+00> : vector<1x8xf32>
    %44 = tpu.matmul %42, %35, %cst_39 {dimension_numbers = #tpu.dot_dimension_numbers<[1], [0], [0], [1], [0, 0, 1, 1], [], []>} : vector<1x8xf32>, vector<8x8xf32>, vector<1x8xf32> -> vector<1x8xf32>
    %45 = arith.addf %43, %44 : vector<1x8xf32>
    %46 = math.tanh %45 : vector<1x8xf32>
    %c0_40 = arith.constant 0 : index
    %c0_41 = arith.constant 0 : index
    %47 = vector.load %arg6[%c0_40, %c0_41] : memref<8x8xf32, #tpu.memory_space<vmem>>, vector<1x8xf32>
    tpu.vector_store %arg6[%c0_40, %c0_41], %46 {strides = array<i32>} : memref<8x8xf32, #tpu.memory_space<vmem>>, vector<1x8xf32>,
    %c1_42 = arith.constant 1 : index
    %c0_43 = arith.constant 0 : index
    %48 = vector.load %arg5[%c1_42, %c0_43] : memref<8x8xf32, #tpu.memory_space<vmem>>, vector<1x8xf32>
    %cst_44 = arith.constant dense<0.000000e+00> : vector<1x8xf32>
    %49 = tpu.matmul %46, %35, %cst_44 {dimension_numbers = #tpu.dot_dimension_numbers<[1], [0], [0], [1], [0, 0, 1, 1], [], []>} : vector<1x8xf32>, vector<8x8xf32>, vector<1x8xf32> -> vector<1x8xf32>
    %50 = arith.addf %48, %49 : vector<1x8xf32>
    %51 = math.tanh %50 : vector<1x8xf32>
    %c1_45 = arith.constant 1 : index
    %c0_46 = arith.constant 0 : index
    %52 = vector.load %arg6[%c1_45, %c0_46] : memref<8x8xf32, #tpu.memory_space<vmem>>, vector<1x8xf32>
    tpu.vector_store %arg6[%c1_45, %c0_46], %51 {strides = array<i32>} : memref<8x8xf32, #tpu.memory_space<vmem>>, vector<1x8xf32>,
    %c2_47 = arith.constant 2 : index
    %c0_48 = arith.constant 0 : index
    %53 = vector.load %arg5[%c2_47, %c0_48] : memref<8x8xf32, #tpu.memory_space<vmem>>, vector<1x8xf32>
    %cst_49 = arith.constant dense<0.000000e+00> : vector<1x8xf32>
    %54 = tpu.matmul %51, %35, %cst_49 {dimension_numbers = #tpu.dot_dimension_numbers<[1], [0], [0], [1], [0, 0, 1, 1], [], []>} : vector<1x8xf32>, vector<8x8xf32>, vector<1x8xf32> -> vector<1x8xf32>
    %55 = arith.addf %53, %54 : vector<1x8xf32>
    %56 = math.tanh %55 : vector<1x8xf32>
    %c2_50 = arith.constant 2 : index
    %c0_51 = arith.constant 0 : index
    %57 = vector.load %arg6[%c2_50, %c0_51] : memref<8x8xf32, #tpu.memory_space<vmem>>, vector<1x8xf32>
    tpu.vector_store %arg6[%c2_50, %c0_51], %56 {strides = array<i32>} : memref<8x8xf32, #tpu.memory_space<vmem>>, vector<1x8xf32>,
    %c3_52 = arith.constant 3 : index
    %c0_53 = arith.constant 0 : index
    %58 = vector.load %arg5[%c3_52, %c0_53] : memref<8x8xf32, #tpu.memory_space<vmem>>, vector<1x8xf32>
    %cst_54 = arith.constant dense<0.000000e+00> : vector<1x8xf32>
    %59 = tpu.matmul %56, %35, %cst_54 {dimension_numbers = #tpu.dot_dimension_numbers<[1], [0], [0], [1], [0, 0, 1, 1], [], []>} : vector<1x8xf32>, vector<8x8xf32>, vector<1x8xf32> -> vector<1x8xf32>
    %60 = arith.addf %58, %59 : vector<1x8xf32>
    %61 = math.tanh %60 : vector<1x8xf32>
    %c3_55 = arith.constant 3 : index
    %c0_56 = arith.constant 0 : index
    %62 = vector.load %arg6[%c3_55, %c0_56] : memref<8x8xf32, #tpu.memory_space<vmem>>, vector<1x8xf32>
    tpu.vector_store %arg6[%c3_55, %c0_56], %61 {strides = array<i32>} : memref<8x8xf32, #tpu.memory_space<vmem>>, vector<1x8xf32>,
    %c4_57 = arith.constant 4 : index
    %c0_58 = arith.constant 0 : index
    %63 = vector.load %arg5[%c4_57, %c0_58] : memref<8x8xf32, #tpu.memory_space<vmem>>, vector<1x8xf32>
    %cst_59 = arith.constant dense<0.000000e+00> : vector<1x8xf32>
    %64 = tpu.matmul %61, %35, %cst_59 {dimension_numbers = #tpu.dot_dimension_numbers<[1], [0], [0], [1], [0, 0, 1, 1], [], []>} : vector<1x8xf32>, vector<8x8xf32>, vector<1x8xf32> -> vector<1x8xf32>
    %65 = arith.addf %63, %64 : vector<1x8xf32>
    %66 = math.tanh %65 : vector<1x8xf32>
    %c4_60 = arith.constant 4 : index
    %c0_61 = arith.constant 0 : index
    %67 = vector.load %arg6[%c4_60, %c0_61] : memref<8x8xf32, #tpu.memory_space<vmem>>, vector<1x8xf32>
    tpu.vector_store %arg6[%c4_60, %c0_61], %66 {strides = array<i32>} : memref<8x8xf32, #tpu.memory_space<vmem>>, vector<1x8xf32>,
    %c0_62 = arith.constant 0 : index
    %c0_63 = arith.constant 0 : index
    %68 = vector.load %arg3[%c0_62, %c0_63] : memref<16x128xf32, #tpu.memory_space<vmem>>, vector<8x128xf32>
    %c8_64 = arith.constant 8 : index
    %c0_65 = arith.constant 0 : index
    %69 = vector.load %arg3[%c8_64, %c0_65] : memref<16x128xf32, #tpu.memory_space<vmem>>, vector<1x128xf32>
    %c0_66 = arith.constant 0 : index
    %c0_67 = arith.constant 0 : index
    %70 = vector.load %arg6[%c0_66, %c0_67] : memref<8x8xf32, #tpu.memory_space<vmem>>, vector<8x8xf32>
    %cst_68 = arith.constant dense<0.000000e+00> : vector<8x128xf32>
    %71 = tpu.matmul %70, %68, %cst_68 {dimension_numbers = #tpu.dot_dimension_numbers<[1], [0], [0], [1], [0, 0, 1, 1], [], []>} : vector<8x8xf32>, vector<8x128xf32>, vector<8x128xf32> -> vector<8x128xf32>
    %72 = vector.broadcast %69 : vector<1x128xf32> to vector<8x128xf32>
    %73 = arith.addf %71, %72 : vector<8x128xf32>
    %c0_69 = arith.constant 0 : index
    %c0_70 = arith.constant 0 : index
    %74 = vector.load %arg4[%c0_69, %c0_70] : memref<8x128xf32, #tpu.memory_space<vmem>>, vector<8x128xf32>
    tpu.vector_store %arg4[%c0_69, %c0_70], %73 {strides = array<i32>} : memref<8x128xf32, #tpu.memory_space<vmem>>, vector<8x128xf32>,
    return
  }
  func.func @transform_0(%arg0: i32, %arg1: memref<5xi32, #tpu.memory_space<smem>>) -> (i32, i32) {
    %c0_i32 = arith.constant 0 : i32
    %c0_i32_0 = arith.constant 0 : i32
    %c0_i32_1 = arith.constant 0 : i32
    return %c0_i32, %c0_i32_0 : i32, i32
  }
  func.func @transform_1(%arg0: i32, %arg1: memref<5xi32, #tpu.memory_space<smem>>) -> (i32, i32) {
    %c0_i32 = arith.constant 0 : i32
    %c0_i32_0 = arith.constant 0 : i32
    %c0_i32_1 = arith.constant 0 : i32
    return %c0_i32, %c0_i32_0 : i32, i32
  }
  func.func @transform_2(%arg0: i32, %arg1: memref<5xi32, #tpu.memory_space<smem>>) -> (i32, i32) {
    %c0_i32 = arith.constant 0 : i32
    %c0_i32_0 = arith.constant 0 : i32
    %c0_i32_1 = arith.constant 0 : i32
    return %c0_i32, %c0_i32_0 : i32, i32
  }
}

</mosaic_0001>

<llo_original>
// kernel: model_forward.1
$region0: #{model_forward.1}
  #allocation0 [shape = 'u32[]', space=smem, size = 0x4, offset = 0x4, fixed_abs, tag = 'smem constant byte address 0x4 - core index']
  #allocation1 [shape = 'u32[144,128]{1,0:T(1,128)}', space=vmem, size = 0x12000, scoped, tag = 'internal scratch']
  #allocation2 [shape = 'f32[8,8]{1,0:T(8,128)}', space=vmem, size = 0x1000, scoped, tag = 'scratch operand']
  #allocation3 [shape = 'f32[8,8]{1,0:T(8,128)}', space=vmem, size = 0x1000, scoped, tag = 'scratch operand']
  #allocation4 [shape = 's32[1]{0}', space=sflag, size = 0x4, scoped, tag = 'scoped memory for model_forward.1']
  #allocation5 [shape = 'u8[512]{0}', space=smem, size = 0x200, scoped, tag = 'prefetched SMEM operand 0']
  %s0 = inlined_call_operand.vmem [shape: s32[5], index: 0, kind: input, shape index: {}]
  %s1 = inlined_call_operand.vmem [shape: f32[32,8], index: 1, kind: input, shape index: {}]
  %s2 = inlined_call_operand.vmem [shape: f32[16,128], index: 2, kind: input, shape index: {}]
  %s3 = inlined_call_operand.vmem [shape: f32[8,128], index: 3, kind: output, shape index: {}]
  %s4 = sld [smem:[#allocation0]]
  $region18: #{model_forward.1} parent=0
    _
  %s6 = ssub.s32 1, %s4
  %s7 = scalar_select 0, %s6, %s4
  %s8 = sshll.u32 %s0, 4
  %s9 = int_to_ptr.vmem [resolvable:$true] %s8
  %11 = dma.vmem_to_smem %s9, 16, [#allocation5], [#allocation4]
  %12 = dma.done [#allocation4], 16
  %13 = sfence
  // Predicated region
  $region2: #{model_forward.1} parent=0 // pred_check
    _
  $region3: #{model_forward.1} parent=0 // pred_check_branch
    %15 = sbr.rel (0) target = $region5
  $region4: #{model_forward.1} parent=0 // pred_region
    _
  $region5: #{model_forward.1} parent=0 // pred_fallthru
    _
  // Predicated region
  $region6: #{model_forward.1} parent=0 // pred_check
    _
  $region7: #{model_forward.1} parent=0 // pred_check_branch
    %17 = sbr.rel (0) target = $region9
  $region8: #{model_forward.1} parent=0 // pred_region
    _
  $region9: #{model_forward.1} parent=0 // pred_fallthru
    _
  %vm18 = vcmask 64512
  %19 = vst.msk [vmem:[#allocation2] sm:$0xff] %vm18, 0.0
  %20 = vst.msk [vmem:[#allocation3] sm:$0xff] %vm18, 0.0
  %s21 = sld [smem:[#allocation5]]
  %p22 = scmp.gt.s32.totalorder %s21, 0
  %s23 = scalar_select %p22, %s21, 0
  %p24 = scmp.lt.s32.totalorder %s23, 3
  %s25 = scalar_select %p24, %s23, 3
  %s26 = scalar_lea.vmem %s1, %s25
  %v27 = vld [vmem:[%s26] sm:$0x1]
  %vm28 = vcmask 57344
  %29 = vst.msk [vmem:[#allocation2] sm:$0x1] %vm28, %v27
  %s30 = sld [smem:[#allocation5 + $0x1]]
  %p31 = scmp.gt.s32.totalorder %s30, 0
  %s32 = scalar_select %p31, %s30, 0
  %p33 = scmp.lt.s32.totalorder %s32, 3
  %s34 = scalar_select %p33, %s32, 3
  %s35 = scalar_lea.vmem %s1, %s34
  %v36 = vld [vmem:[%s35] sm:$0x1]
  %37 = vst.msk [vmem:[#allocation2 + $0x1] sm:$0x1] %vm28, %v36
  %s38 = sld [smem:[#allocation5 + $0x2]]
  %p39 = scmp.gt.s32.totalorder %s38, 0
  %s40 = scalar_select %p39, %s38, 0
  %p41 = scmp.lt.s32.totalorder %s40, 3
  %s42 = scalar_select %p41, %s40, 3
  %s43 = scalar_lea.vmem %s1, %s42
  %v44 = vld [vmem:[%s43] sm:$0x1]
  %45 = vst.msk [vmem:[#allocation2 + $0x2] sm:$0x1] %vm28, %v44
  %s46 = sld [smem:[#allocation5 + $0x3]]
  %p47 = scmp.gt.s32.totalorder %s46, 0
  %s48 = scalar_select %p47, %s46, 0
  %p49 = scmp.lt.s32.totalorder %s48, 3
  %s50 = scalar_select %p49, %s48, 3
  %s51 = scalar_lea.vmem %s1, %s50
  %v52 = vld [vmem:[%s51] sm:$0x1]
  %53 = vst.msk [vmem:[#allocation2 + $0x3] sm:$0x1] %vm28, %v52
  %s54 = sld [smem:[#allocation5 + $0x4]]
  %p55 = scmp.gt.s32.totalorder %s54, 0
  %s56 = scalar_select %p55, %s54, 0
  %p57 = scmp.lt.s32.totalorder %s56, 3
  %s58 = scalar_select %p57, %s56, 3
  %s59 = scalar_lea.vmem %s1, %s58
  %v60 = vld [vmem:[%s59] sm:$0x1]
  %61 = vst.msk [vmem:[#allocation2 + $0x4] sm:$0x1] %vm28, %v60
  %v62 = vld [vmem:[%s1 + $0x8] sm:$0xff]
  %v63 = vld [vmem:[%s1 + $0x10] sm:$0xff]
  %v64 = vld [vmem:[%s1 + $0x18] sm:$0x1]
  %v65 = vld [vmem:[#allocation2] sm:$0xff]
  %v66 = vlaneseq
  %v67 = vshrl.u32 %v66, 7
  %v68 = vsub.s32 0, %v67
  %v69 = vrot.slane %v64, %v68
  %v71 = vsel %vm18, %v65, 0
  %73 = vmatprep.subr.mxu0 0.0
  %74 = vmatpush1.msra.mxu0 0.0
  %75 = vmatprep.subr.mxu0 0.0
  %76 = vmatpush1.msra.mxu0 0.0
  %77 = vmatprep.subr.mxu0 0.0
  %78 = vmatpush1.msra.mxu0 0.0
  %79 = vmatprep.subr.mxu0 0.0
  %80 = vmatpush1.msra.mxu0 0.0
  %81 = vmatprep.subr.mxu0 0.0
  %82 = vmatpush1.msra.mxu0 0.0
  %83 = vmatprep.subr.mxu0 0.0
  %84 = vmatpush1.msra.mxu0 0.0
  %85 = vmatprep.subr.mxu0 0.0
  %86 = vmatpush1.msra.mxu0 0.0
  %87 = vmatprep.subr.mxu0 0.0
  %88 = vmatpush1.msra.mxu0 0.0
  %89 = vmatprep.subr.mxu0 0.0
  %90 = vmatpush1.msra.mxu0 0.0
  %91 = vmatprep.subr.mxu0 0.0
  %92 = vmatpush1.msra.mxu0 0.0
  %93 = vmatprep.subr.mxu0 0.0
  %94 = vmatpush1.msra.mxu0 0.0
  %95 = vmatprep.subr.mxu0 0.0
  %96 = vmatpush1.msra.mxu0 0.0
  %97 = vmatprep.subr.mxu0 0.0
  %98 = vmatpush1.msra.mxu0 0.0
  %99 = vmatprep.subr.mxu0 0.0
  %100 = vmatpush1.msra.mxu0 0.0
  %101 = vmatprep.subr.mxu0 0.0
  %102 = vmatpush1.msra.mxu0 0.0
  %103 = vmatprep.subr.mxu0 0.0
  %104 = vmatpush1.msra.mxu0 %v62
  %105 = vmatprep.subr.mxu0 0.0
  %106 = vmatpush2.msra.mxu0 0.0
  %107 = vmatprep.subr.mxu0 0.0
  %108 = vmatpush2.msra.mxu0 0.0
  %109 = vmatprep.subr.mxu0 0.0
  %110 = vmatpush2.msra.mxu0 0.0
  %111 = vmatprep.subr.mxu0 0.0
  %112 = vmatpush2.msra.mxu0 0.0
  %113 = vmatprep.subr.mxu0 0.0
  %114 = vmatpush2.msra.mxu0 0.0
  %115 = vmatprep.subr.mxu0 0.0
  %116 = vmatpush2.msra.mxu0 0.0
  %117 = vmatprep.subr.mxu0 0.0
  %118 = vmatpush2.msra.mxu0 0.0
  %119 = vmatprep.subr.mxu0 0.0
  %120 = vmatpush2.msra.mxu0 0.0
  %121 = vmatprep.subr.mxu0 0.0
  %122 = vmatpush2.msra.mxu0 0.0
  %123 = vmatprep.subr.mxu0 0.0
  %124 = vmatpush2.msra.mxu0 0.0
  %125 = vmatprep.subr.mxu0 0.0
  %126 = vmatpush2.msra.mxu0 0.0
  %127 = vmatprep.subr.mxu0 0.0
  %128 = vmatpush2.msra.mxu0 0.0
  %129 = vmatprep.subr.mxu0 0.0
  %130 = vmatpush2.msra.mxu0 0.0
  %131 = vmatprep.subr.mxu0 0.0
  %132 = vmatpush2.msra.mxu0 0.0
  %133 = vmatprep.subr.mxu0 0.0
  %134 = vmatpush2.msra.mxu0 0.0
  %135 = vmatprep.subr.mxu0 0.0
  %136 = vmatpush2.msra.mxu0 0.0
  %137 = vmatprep.mubr.f32.mxu0 0.0
  %138 = vmatmul.mubr.f32.gmra.mxu0 %v71
  %v139 = vpop.f32.mrf.mxu0
  %v140 = vadd.f32 %v69, %v139
  %v141 = vpop.f32.mrf.mxu0
  %142 = vdwg.mxu0
  %143 = vst.msk [vmem:[#allocation2] sm:$0xff] %vm18, %v140
  %v144 = vld [vmem:[#allocation2] sm:$0x1]
  %v146 = vsel %vm18, 0.0, 0
  %148 = vmatprep.subr.mxu0 0.0
  %149 = vmatpush1.msra.mxu0 0.0
  %150 = vmatprep.subr.mxu0 0.0
  %151 = vmatpush1.msra.mxu0 0.0
  %152 = vmatprep.subr.mxu0 0.0
  %153 = vmatpush1.msra.mxu0 0.0
  %154 = vmatprep.subr.mxu0 0.0
  %155 = vmatpush1.msra.mxu0 0.0
  %156 = vmatprep.subr.mxu0 0.0
  %157 = vmatpush1.msra.mxu0 0.0
  %158 = vmatprep.subr.mxu0 0.0
  %159 = vmatpush1.msra.mxu0 0.0
  %160 = vmatprep.subr.mxu0 0.0
  %161 = vmatpush1.msra.mxu0 0.0
  %162 = vmatprep.subr.mxu0 0.0
  %163 = vmatpush1.msra.mxu0 0.0
  %164 = vmatprep.subr.mxu0 0.0
  %165 = vmatpush1.msra.mxu0 0.0
  %166 = vmatprep.subr.mxu0 0.0
  %167 = vmatpush1.msra.mxu0 0.0
  %168 = vmatprep.subr.mxu0 0.0
  %169 = vmatpush1.msra.mxu0 0.0
  %170 = vmatprep.subr.mxu0 0.0
  %171 = vmatpush1.msra.mxu0 0.0
  %172 = vmatprep.subr.mxu0 0.0
  %173 = vmatpush1.msra.mxu0 0.0
  %174 = vmatprep.subr.mxu0 0.0
  %175 = vmatpush1.msra.mxu0 0.0
  %176 = vmatprep.subr.mxu0 0.0
  %177 = vmatpush1.msra.mxu0 0.0
  %178 = vmatprep.subr.mxu0 0.0
  %179 = vmatpush1.msra.mxu0 %v63
  %180 = vmatprep.subr.mxu0 0.0
  %181 = vmatpush2.msra.mxu0 0.0
  %182 = vmatprep.subr.mxu0 0.0
  %183 = vmatpush2.msra.mxu0 0.0
  %184 = vmatprep.subr.mxu0 0.0
  %185 = vmatpush2.msra.mxu0 0.0
  %186 = vmatprep.subr.mxu0 0.0
  %187 = vmatpush2.msra.mxu0 0.0
  %188 = vmatprep.subr.mxu0 0.0
  %189 = vmatpush2.msra.mxu0 0.0
  %190 = vmatprep.subr.mxu0 0.0
  %191 = vmatpush2.msra.mxu0 0.0
  %192 = vmatprep.subr.mxu0 0.0
  %193 = vmatpush2.msra.mxu0 0.0
  %194 = vmatprep.subr.mxu0 0.0
  %195 = vmatpush2.msra.mxu0 0.0
  %196 = vmatprep.subr.mxu0 0.0
  %197 = vmatpush2.msra.mxu0 0.0
  %198 = vmatprep.subr.mxu0 0.0
  %199 = vmatpush2.msra.mxu0 0.0
  %200 = vmatprep.subr.mxu0 0.0
  %201 = vmatpush2.msra.mxu0 0.0
  %202 = vmatprep.subr.mxu0 0.0
  %203 = vmatpush2.msra.mxu0 0.0
  %204 = vmatprep.subr.mxu0 0.0
  %205 = vmatpush2.msra.mxu0 0.0
  %206 = vmatprep.subr.mxu0 0.0
  %207 = vmatpush2.msra.mxu0 0.0
  %208 = vmatprep.subr.mxu0 0.0
  %209 = vmatpush2.msra.mxu0 0.0
  %210 = vmatprep.subr.mxu0 0.0
  %211 = vmatpush2.msra.mxu0 0.0
  %212 = vmatprep.mubr.f32.mxu0 0.0
  %213 = vmatmul.mubr.f32.gmra.mxu0 %v146
  %v214 = vpop.f32.mrf.mxu0
  %v215 = vadd.f32 0.0, %v214
  %v216 = vpop.f32.mrf.mxu0
  %217 = vdwg.mxu0
  %v218 = vadd.f32 %v144, %v215
  %v219 = vtanh.pop %v218
  %220 = vst.msk [vmem:[#allocation3] sm:$0x1] %vm28, %v219
  %v221 = vld [vmem:[#allocation2 + $0x1] sm:$0x1]
  %v223 = vsel %vm18, %v219, 0
  %225 = vmatprep.subr.mxu0 0.0
  %226 = vmatpush1.msra.mxu0 0.0
  %227 = vmatprep.subr.mxu0 0.0
  %228 = vmatpush1.msra.mxu0 0.0
  %229 = vmatprep.subr.mxu0 0.0
  %230 = vmatpush1.msra.mxu0 0.0
  %231 = vmatprep.subr.mxu0 0.0
  %232 = vmatpush1.msra.mxu0 0.0
  %233 = vmatprep.subr.mxu0 0.0
  %234 = vmatpush1.msra.mxu0 0.0
  %235 = vmatprep.subr.mxu0 0.0
  %236 = vmatpush1.msra.mxu0 0.0
  %237 = vmatprep.subr.mxu0 0.0
  %238 = vmatpush1.msra.mxu0 0.0
  %239 = vmatprep.subr.mxu0 0.0
  %240 = vmatpush1.msra.mxu0 0.0
  %241 = vmatprep.subr.mxu0 0.0
  %242 = vmatpush1.msra.mxu0 0.0
  %243 = vmatprep.subr.mxu0 0.0
  %244 = vmatpush1.msra.mxu0 0.0
  %245 = vmatprep.subr.mxu0 0.0
  %246 = vmatpush1.msra.mxu0 0.0
  %247 = vmatprep.subr.mxu0 0.0
  %248 = vmatpush1.msra.mxu0 0.0
  %249 = vmatprep.subr.mxu0 0.0
  %250 = vmatpush1.msra.mxu0 0.0
  %251 = vmatprep.subr.mxu0 0.0
  %252 = vmatpush1.msra.mxu0 0.0
  %253 = vmatprep.subr.mxu0 0.0
  %254 = vmatpush1.msra.mxu0 0.0
  %255 = vmatprep.subr.mxu0 0.0
  %256 = vmatpush1.msra.mxu0 %v63
  %257 = vmatprep.subr.mxu0 0.0
  %258 = vmatpush2.msra.mxu0 0.0
  %259 = vmatprep.subr.mxu0 0.0
  %260 = vmatpush2.msra.mxu0 0.0
  %261 = vmatprep.subr.mxu0 0.0
  %262 = vmatpush2.msra.mxu0 0.0
  %263 = vmatprep.subr.mxu0 0.0
  %264 = vmatpush2.msra.mxu0 0.0
  %265 = vmatprep.subr.mxu0 0.0
  %266 = vmatpush2.msra.mxu0 0.0
  %267 = vmatprep.subr.mxu0 0.0
  %268 = vmatpush2.msra.mxu0 0.0
  %269 = vmatprep.subr.mxu0 0.0
  %270 = vmatpush2.msra.mxu0 0.0
  %271 = vmatprep.subr.mxu0 0.0
  %272 = vmatpush2.msra.mxu0 0.0
  %273 = vmatprep.subr.mxu0 0.0
  %274 = vmatpush2.msra.mxu0 0.0
  %275 = vmatprep.subr.mxu0 0.0
  %276 = vmatpush2.msra.mxu0 0.0
  %277 = vmatprep.subr.mxu0 0.0
  %278 = vmatpush2.msra.mxu0 0.0
  %279 = vmatprep.subr.mxu0 0.0
  %280 = vmatpush2.msra.mxu0 0.0
  %281 = vmatprep.subr.mxu0 0.0
  %282 = vmatpush2.msra.mxu0 0.0
  %283 = vmatprep.subr.mxu0 0.0
  %284 = vmatpush2.msra.mxu0 0.0
  %285 = vmatprep.subr.mxu0 0.0
  %286 = vmatpush2.msra.mxu0 0.0
  %287 = vmatprep.subr.mxu0 0.0
  %288 = vmatpush2.msra.mxu0 0.0
  %289 = vmatprep.mubr.f32.mxu0 0.0
  %290 = vmatmul.mubr.f32.gmra.mxu0 %v223
  %v291 = vpop.f32.mrf.mxu0
  %v292 = vadd.f32 0.0, %v291
  %v293 = vpop.f32.mrf.mxu0
  %294 = vdwg.mxu0
  %v295 = vadd.f32 %v221, %v292
  %v296 = vtanh.pop %v295
  %297 = vst.msk [vmem:[#allocation3 + $0x1] sm:$0x1] %vm28, %v296
  %v298 = vld [vmem:[#allocation2 + $0x2] sm:$0x1]
  %v300 = vsel %vm18, %v296, 0
  %302 = vmatprep.subr.mxu0 0.0
  %303 = vmatpush1.msra.mxu0 0.0
  %304 = vmatprep.subr.mxu0 0.0
  %305 = vmatpush1.msra.mxu0 0.0
  %306 = vmatprep.subr.mxu0 0.0
  %307 = vmatpush1.msra.mxu0 0.0
  %308 = vmatprep.subr.mxu0 0.0
  %309 = vmatpush1.msra.mxu0 0.0
  %310 = vmatprep.subr.mxu0 0.0
  %311 = vmatpush1.msra.mxu0 0.0
  %312 = vmatprep.subr.mxu0 0.0
  %313 = vmatpush1.msra.mxu0 0.0
  %314 = vmatprep.subr.mxu0 0.0
  %315 = vmatpush1.msra.mxu0 0.0
  %316 = vmatprep.subr.mxu0 0.0
  %317 = vmatpush1.msra.mxu0 0.0
  %318 = vmatprep.subr.mxu0 0.0
  %319 = vmatpush1.msra.mxu0 0.0
  %320 = vmatprep.subr.mxu0 0.0
  %321 = vmatpush1.msra.mxu0 0.0
  %322 = vmatprep.subr.mxu0 0.0
  %323 = vmatpush1.msra.mxu0 0.0
  %324 = vmatprep.subr.mxu0 0.0
  %325 = vmatpush1.msra.mxu0 0.0
  %326 = vmatprep.subr.mxu0 0.0
  %327 = vmatpush1.msra.mxu0 0.0
  %328 = vmatprep.subr.mxu0 0.0
  %329 = vmatpush1.msra.mxu0 0.0
  %330 = vmatprep.subr.mxu0 0.0
  %331 = vmatpush1.msra.mxu0 0.0
  %332 = vmatprep.subr.mxu0 0.0
  %333 = vmatpush1.msra.mxu0 %v63
  %334 = vmatprep.subr.mxu0 0.0
  %335 = vmatpush2.msra.mxu0 0.0
  %336 = vmatprep.subr.mxu0 0.0
  %337 = vmatpush2.msra.mxu0 0.0
  %338 = vmatprep.subr.mxu0 0.0
  %339 = vmatpush2.msra.mxu0 0.0
  %340 = vmatprep.subr.mxu0 0.0
  %341 = vmatpush2.msra.mxu0 0.0
  %342 = vmatprep.subr.mxu0 0.0
  %343 = vmatpush2.msra.mxu0 0.0
  %344 = vmatprep.subr.mxu0 0.0
  %345 = vmatpush2.msra.mxu0 0.0
  %346 = vmatprep.subr.mxu0 0.0
  %347 = vmatpush2.msra.mxu0 0.0
  %348 = vmatprep.subr.mxu0 0.0
  %349 = vmatpush2.msra.mxu0 0.0
  %350 = vmatprep.subr.mxu0 0.0
  %351 = vmatpush2.msra.mxu0 0.0
  %352 = vmatprep.subr.mxu0 0.0
  %353 = vmatpush2.msra.mxu0 0.0
  %354 = vmatprep.subr.mxu0 0.0
  %355 = vmatpush2.msra.mxu0 0.0
  %356 = vmatprep.subr.mxu0 0.0
  %357 = vmatpush2.msra.mxu0 0.0
  %358 = vmatprep.subr.mxu0 0.0
  %359 = vmatpush2.msra.mxu0 0.0
  %360 = vmatprep.subr.mxu0 0.0
  %361 = vmatpush2.msra.mxu0 0.0
  %362 = vmatprep.subr.mxu0 0.0
  %363 = vmatpush2.msra.mxu0 0.0
  %364 = vmatprep.subr.mxu0 0.0
  %365 = vmatpush2.msra.mxu0 0.0
  %366 = vmatprep.mubr.f32.mxu0 0.0
  %367 = vmatmul.mubr.f32.gmra.mxu0 %v300
  %v368 = vpop.f32.mrf.mxu0
  %v369 = vadd.f32 0.0, %v368
  %v370 = vpop.f32.mrf.mxu0
  %371 = vdwg.mxu0
  %v372 = vadd.f32 %v298, %v369
  %v373 = vtanh.pop %v372
  %374 = vst.msk [vmem:[#allocation3 + $0x2] sm:$0x1] %vm28, %v373
  %v375 = vld [vmem:[#allocation2 + $0x3] sm:$0x1]
  %v377 = vsel %vm18, %v373, 0
  %379 = vmatprep.subr.mxu0 0.0
  %380 = vmatpush1.msra.mxu0 0.0
  %381 = vmatprep.subr.mxu0 0.0
  %382 = vmatpush1.msra.mxu0 0.0
  %383 = vmatprep.subr.mxu0 0.0
  %384 = vmatpush1.msra.mxu0 0.0
  %385 = vmatprep.subr.mxu0 0.0
  %386 = vmatpush1.msra.mxu0 0.0
  %387 = vmatprep.subr.mxu0 0.0
  %388 = vmatpush1.msra.mxu0 0.0
  %389 = vmatprep.subr.mxu0 0.0
  %390 = vmatpush1.msra.mxu0 0.0
  %391 = vmatprep.subr.mxu0 0.0
  %392 = vmatpush1.msra.mxu0 0.0
  %393 = vmatprep.subr.mxu0 0.0
  %394 = vmatpush1.msra.mxu0 0.0
  %395 = vmatprep.subr.mxu0 0.0
  %396 = vmatpush1.msra.mxu0 0.0
  %397 = vmatprep.subr.mxu0 0.0
  %398 = vmatpush1.msra.mxu0 0.0
  %399 = vmatprep.subr.mxu0 0.0
  %400 = vmatpush1.msra.mxu0 0.0
  %401 = vmatprep.subr.mxu0 0.0
  %402 = vmatpush1.msra.mxu0 0.0
  %403 = vmatprep.subr.mxu0 0.0
  %404 = vmatpush1.msra.mxu0 0.0
  %405 = vmatprep.subr.mxu0 0.0
  %406 = vmatpush1.msra.mxu0 0.0
  %407 = vmatprep.subr.mxu0 0.0
  %408 = vmatpush1.msra.mxu0 0.0
  %409 = vmatprep.subr.mxu0 0.0
  %410 = vmatpush1.msra.mxu0 %v63
  %411 = vmatprep.subr.mxu0 0.0
  %412 = vmatpush2.msra.mxu0 0.0
  %413 = vmatprep.subr.mxu0 0.0
  %414 = vmatpush2.msra.mxu0 0.0
  %415 = vmatprep.subr.mxu0 0.0
  %416 = vmatpush2.msra.mxu0 0.0
  %417 = vmatprep.subr.mxu0 0.0
  %418 = vmatpush2.msra.mxu0 0.0
  %419 = vmatprep.subr.mxu0 0.0
  %420 = vmatpush2.msra.mxu0 0.0
  %421 = vmatprep.subr.mxu0 0.0
  %422 = vmatpush2.msra.mxu0 0.0
  %423 = vmatprep.subr.mxu0 0.0
  %424 = vmatpush2.msra.mxu0 0.0
  %425 = vmatprep.subr.mxu0 0.0
  %426 = vmatpush2.msra.mxu0 0.0
  %427 = vmatprep.subr.mxu0 0.0
  %428 = vmatpush2.msra.mxu0 0.0
  %429 = vmatprep.subr.mxu0 0.0
  %430 = vmatpush2.msra.mxu0 0.0
  %431 = vmatprep.subr.mxu0 0.0
  %432 = vmatpush2.msra.mxu0 0.0
  %433 = vmatprep.subr.mxu0 0.0
  %434 = vmatpush2.msra.mxu0 0.0
  %435 = vmatprep.subr.mxu0 0.0
  %436 = vmatpush2.msra.mxu0 0.0
  %437 = vmatprep.subr.mxu0 0.0
  %438 = vmatpush2.msra.mxu0 0.0
  %439 = vmatprep.subr.mxu0 0.0
  %440 = vmatpush2.msra.mxu0 0.0
  %441 = vmatprep.subr.mxu0 0.0
  %442 = vmatpush2.msra.mxu0 0.0
  %443 = vmatprep.mubr.f32.mxu0 0.0
  %444 = vmatmul.mubr.f32.gmra.mxu0 %v377
  %v445 = vpop.f32.mrf.mxu0
  %v446 = vadd.f32 0.0, %v445
  %v447 = vpop.f32.mrf.mxu0
  %448 = vdwg.mxu0
  %v449 = vadd.f32 %v375, %v446
  %v450 = vtanh.pop %v449
  %451 = vst.msk [vmem:[#allocation3 + $0x3] sm:$0x1] %vm28, %v450
  %v452 = vld [vmem:[#allocation2 + $0x4] sm:$0x1]
  %v454 = vsel %vm18, %v450, 0
  %456 = vmatprep.subr.mxu0 0.0
  %457 = vmatpush1.msra.mxu0 0.0
  %458 = vmatprep.subr.mxu0 0.0
  %459 = vmatpush1.msra.mxu0 0.0
  %460 = vmatprep.subr.mxu0 0.0
  %461 = vmatpush1.msra.mxu0 0.0
  %462 = vmatprep.subr.mxu0 0.0
  %463 = vmatpush1.msra.mxu0 0.0
  %464 = vmatprep.subr.mxu0 0.0
  %465 = vmatpush1.msra.mxu0 0.0
  %466 = vmatprep.subr.mxu0 0.0
  %467 = vmatpush1.msra.mxu0 0.0
  %468 = vmatprep.subr.mxu0 0.0
  %469 = vmatpush1.msra.mxu0 0.0
  %470 = vmatprep.subr.mxu0 0.0
  %471 = vmatpush1.msra.mxu0 0.0
  %472 = vmatprep.subr.mxu0 0.0
  %473 = vmatpush1.msra.mxu0 0.0
  %474 = vmatprep.subr.mxu0 0.0
  %475 = vmatpush1.msra.mxu0 0.0
  %476 = vmatprep.subr.mxu0 0.0
  %477 = vmatpush1.msra.mxu0 0.0
  %478 = vmatprep.subr.mxu0 0.0
  %479 = vmatpush1.msra.mxu0 0.0
  %480 = vmatprep.subr.mxu0 0.0
  %481 = vmatpush1.msra.mxu0 0.0
  %482 = vmatprep.subr.mxu0 0.0
  %483 = vmatpush1.msra.mxu0 0.0
  %484 = vmatprep.subr.mxu0 0.0
  %485 = vmatpush1.msra.mxu0 0.0
  %486 = vmatprep.subr.mxu0 0.0
  %487 = vmatpush1.msra.mxu0 %v63
  %488 = vmatprep.subr.mxu0 0.0
  %489 = vmatpush2.msra.mxu0 0.0
  %490 = vmatprep.subr.mxu0 0.0
  %491 = vmatpush2.msra.mxu0 0.0
  %492 = vmatprep.subr.mxu0 0.0
  %493 = vmatpush2.msra.mxu0 0.0
  %494 = vmatprep.subr.mxu0 0.0
  %495 = vmatpush2.msra.mxu0 0.0
  %496 = vmatprep.subr.mxu0 0.0
  %497 = vmatpush2.msra.mxu0 0.0
  %498 = vmatprep.subr.mxu0 0.0
  %499 = vmatpush2.msra.mxu0 0.0
  %500 = vmatprep.subr.mxu0 0.0
  %501 = vmatpush2.msra.mxu0 0.0
  %502 = vmatprep.subr.mxu0 0.0
  %503 = vmatpush2.msra.mxu0 0.0
  %504 = vmatprep.subr.mxu0 0.0
  %505 = vmatpush2.msra.mxu0 0.0
  %506 = vmatprep.subr.mxu0 0.0
  %507 = vmatpush2.msra.mxu0 0.0
  %508 = vmatprep.subr.mxu0 0.0
  %509 = vmatpush2.msra.mxu0 0.0
  %510 = vmatprep.subr.mxu0 0.0
  %511 = vmatpush2.msra.mxu0 0.0
  %512 = vmatprep.subr.mxu0 0.0
  %513 = vmatpush2.msra.mxu0 0.0
  %514 = vmatprep.subr.mxu0 0.0
  %515 = vmatpush2.msra.mxu0 0.0
  %516 = vmatprep.subr.mxu0 0.0
  %517 = vmatpush2.msra.mxu0 0.0
  %518 = vmatprep.subr.mxu0 0.0
  %519 = vmatpush2.msra.mxu0 0.0
  %520 = vmatprep.mubr.f32.mxu0 0.0
  %521 = vmatmul.mubr.f32.gmra.mxu0 %v454
  %v522 = vpop.f32.mrf.mxu0
  %v523 = vadd.f32 0.0, %v522
  %v524 = vpop.f32.mrf.mxu0
  %525 = vdwg.mxu0
  %v526 = vadd.f32 %v452, %v523
  %v527 = vtanh.pop %v526
  %528 = vst.msk [vmem:[#allocation3 + $0x4] sm:$0x1] %vm28, %v527
  %v529 = vld [vmem:[%s2] sm:$0xff]
  %v530 = vld [vmem:[%s2 + $0x8] sm:$0x1]
  %v531 = vld [vmem:[#allocation3] sm:$0xff]
  %v532 = vlaneseq
  %v533 = vshrl.u32 %v532, 7
  %v534 = vsub.s32 0, %v533
  %v535 = vrot.slane %v530, %v534
  %v537 = vsel %vm18, %v531, 0
  %539 = vmatprep.subr.mxu0 0.0
  %540 = vmatpush1.msra.mxu0 0.0
  %541 = vmatprep.subr.mxu0 0.0
  %542 = vmatpush1.msra.mxu0 0.0
  %543 = vmatprep.subr.mxu0 0.0
  %544 = vmatpush1.msra.mxu0 0.0
  %545 = vmatprep.subr.mxu0 0.0
  %546 = vmatpush1.msra.mxu0 0.0
  %547 = vmatprep.subr.mxu0 0.0
  %548 = vmatpush1.msra.mxu0 0.0
  %549 = vmatprep.subr.mxu0 0.0
  %550 = vmatpush1.msra.mxu0 0.0
  %551 = vmatprep.subr.mxu0 0.0
  %552 = vmatpush1.msra.mxu0 0.0
  %553 = vmatprep.subr.mxu0 0.0
  %554 = vmatpush1.msra.mxu0 0.0
  %555 = vmatprep.subr.mxu0 0.0
  %556 = vmatpush1.msra.mxu0 0.0
  %557 = vmatprep.subr.mxu0 0.0
  %558 = vmatpush1.msra.mxu0 0.0
  %559 = vmatprep.subr.mxu0 0.0
  %560 = vmatpush1.msra.mxu0 0.0
  %561 = vmatprep.subr.mxu0 0.0
  %562 = vmatpush1.msra.mxu0 0.0
  %563 = vmatprep.subr.mxu0 0.0
  %564 = vmatpush1.msra.mxu0 0.0
  %565 = vmatprep.subr.mxu0 0.0
  %566 = vmatpush1.msra.mxu0 0.0
  %567 = vmatprep.subr.mxu0 0.0
  %568 = vmatpush1.msra.mxu0 0.0
  %569 = vmatprep.subr.mxu0 0.0
  %570 = vmatpush1.msra.mxu0 %v529
  %571 = vmatprep.subr.mxu0 0.0
  %572 = vmatpush2.msra.mxu0 0.0
  %573 = vmatprep.subr.mxu0 0.0
  %574 = vmatpush2.msra.mxu0 0.0
  %575 = vmatprep.subr.mxu0 0.0
  %576 = vmatpush2.msra.mxu0 0.0
  %577 = vmatprep.subr.mxu0 0.0
  %578 = vmatpush2.msra.mxu0 0.0
  %579 = vmatprep.subr.mxu0 0.0
  %580 = vmatpush2.msra.mxu0 0.0
  %581 = vmatprep.subr.mxu0 0.0
  %582 = vmatpush2.msra.mxu0 0.0
  %583 = vmatprep.subr.mxu0 0.0
  %584 = vmatpush2.msra.mxu0 0.0
  %585 = vmatprep.subr.mxu0 0.0
  %586 = vmatpush2.msra.mxu0 0.0
  %587 = vmatprep.subr.mxu0 0.0
  %588 = vmatpush2.msra.mxu0 0.0
  %589 = vmatprep.subr.mxu0 0.0
  %590 = vmatpush2.msra.mxu0 0.0
  %591 = vmatprep.subr.mxu0 0.0
  %592 = vmatpush2.msra.mxu0 0.0
  %593 = vmatprep.subr.mxu0 0.0
  %594 = vmatpush2.msra.mxu0 0.0
  %595 = vmatprep.subr.mxu0 0.0
  %596 = vmatpush2.msra.mxu0 0.0
  %597 = vmatprep.subr.mxu0 0.0
  %598 = vmatpush2.msra.mxu0 0.0
  %599 = vmatprep.subr.mxu0 0.0
  %600 = vmatpush2.msra.mxu0 0.0
  %601 = vmatprep.subr.mxu0 0.0
  %602 = vmatpush2.msra.mxu0 0.0
  %603 = vmatprep.mubr.f32.mxu0 0.0
  %604 = vmatmul.mubr.f32.gmra.mxu0 %v537
  %v605 = vpop.f32.mrf.mxu0
  %v606 = vadd.f32 %v535, %v605
  %v607 = vpop.f32.mrf.mxu0
  %608 = vdwg.mxu0
  %609 = vst [vmem:[%s3] sm:$0xff] %v606
  // Predicated region
  $region10: #{model_forward.1} parent=0 // pred_check
    _
  $region11: #{model_forward.1} parent=0 // pred_check_branch
    %611 = sbr.rel (0) target = $region13
  $region12: #{model_forward.1} parent=0 // pred_region
    _
  $region13: #{model_forward.1} parent=0 // pred_fallthru
    _
  // Predicated region
  $region14: #{model_forward.1} parent=0 // pred_check
    _
  $region15: #{model_forward.1} parent=0 // pred_check_branch
    %613 = sbr.rel (0) target = $region17
  $region16: #{model_forward.1} parent=0 // pred_region
    _
  $region17: #{model_forward.1} parent=0 // pred_fallthru
    _

</llo_original>
